<compile_context>
chip_gen: v6e
topology: v6e:2x2x1
jax: 0.10.0
libtpu: 0.0.40
codegen_flags: <defaults>
</compile_context>

<pallas_src>
import math

import jax
import jax.numpy as jnp
from jax.experimental import pallas as pl
from jax.experimental.pallas import tpu as pltpu


def _round_up(x, m):
    return (x + m - 1) // m * m


def qnetwork_kernel(x_ref,
                    w1_ref, b1_ref,
                    w2_ref, b2_ref,
                    w3_ref, b3_ref,
                    w4_ref, b4_ref,
                    o_ref):
    """Fused MLP forward: relu(relu(relu(x@W1+b1)@W2+b2)@W3+b3)@W4+b4."""
    cdt = w1_ref.dtype  # MXU input dtype (bfloat16); accumulation is f32.

    h = x_ref[...].astype(cdt)
    h = jnp.dot(h, w1_ref[...], preferred_element_type=jnp.float32) + b1_ref[...]
    # ReLU after the bf16 cast: identical result, half the VALU passes.
    h = jnp.maximum(h.astype(cdt), 0)

    h = jnp.dot(h, w2_ref[...], preferred_element_type=jnp.float32) + b2_ref[...]
    h = jnp.maximum(h.astype(cdt), 0)

    h = jnp.dot(h, w3_ref[...], preferred_element_type=jnp.float32) + b3_ref[...]
    h = jnp.maximum(h.astype(cdt), 0)

    q = jnp.dot(h, w4_ref[...], preferred_element_type=jnp.float32) + b4_ref[...]
    # Store only the real action columns (narrow output block -> ~32x less
    # HBM writeback than the 128-padded f32 output).
    o_ref[...] = q[:, :o_ref.shape[-1]].astype(o_ref.dtype)


def init_qnetwork_params(key, state_size, action_size,
                         layer_sizes=(512, 128, 32)):
    """f32 params matching nn.Linear default init U(-1/sqrt(in), 1/sqrt(in)).
    Weights stored transposed: (in_features, out_features)."""
    dims = [state_size, *layer_sizes, action_size]
    params = []
    for fan_in, fan_out in zip(dims[:-1], dims[1:]):
        key, kw, kb = jax.random.split(key, 3)
        bound = 1.0 / jnp.sqrt(jnp.float32(fan_in))
        w = jax.random.uniform(kw, (fan_in, fan_out), jnp.float32,
                               minval=-bound, maxval=bound)
        b = jax.random.uniform(kb, (1, fan_out), jnp.float32,
                               minval=-bound, maxval=bound)
        params.append((w, b))
    return params


def pack_params(params, *, compute_dtype=jnp.bfloat16, lane=128, k_align=16):
    """Cast weights to compute_dtype and zero-pad:
      * first layer's input dim to a multiple of k_align (bf16 sublane pack),
      * every layer's output dim to a multiple of `lane`.
    Zero padding is mathematically exact (ReLU(0)=0 feeding zero rows)."""
    packed = []
    prev_out_pad = None
    for idx, (w, b) in enumerate(params):
        fan_in, fan_out = w.shape
        in_pad = _round_up(fan_in, k_align) if idx == 0 else prev_out_pad
        out_pad = _round_up(fan_out, lane)
        wp = jnp.zeros((in_pad, out_pad), compute_dtype)
        wp = wp.at[:fan_in, :fan_out].set(w.astype(compute_dtype))
        bp = jnp.zeros((1, out_pad), jnp.float32)
        bp = bp.at[:, :fan_out].set(b.astype(jnp.float32))
        packed.append((wp, bp))
        prev_out_pad = out_pad
    return packed


def qnetwork_forward(state, packed_params, *, action_size, block_b=1024):
    """state: (B, state_size) f32 (or bf16). Returns (B, action_size) f32.

    block_b is the batch-tile sweep knob (512-2048 is the good range; 1024
    keeps total VMEM well under v5e's 16 MiB scoped default even before the
    explicit 32 MiB limit below)."""
    B, S = state.shape
    (w1, b1), (w2, b2), (w3, b3), (w4, b4) = packed_params
    flat = [w1, b1, w2, b2, w3, b3, w4, b4]
    k_pad = w1.shape[0]              # padded state dim (multiple of 16)

    def pad_input(rows_to, cols_to):
        pr, pc = rows_to - B, cols_to - S
        if pr == 0 and pc == 0:
            return state
        return jnp.pad(state, ((0, pr), (0, pc)))

    # --- Small-batch fast path: one VMEM-resident block, no grid/pipeline.
    # (Kept small so medium batches still get >=2 grid steps on v7x.)
    if B <= 256:
        bp = _round_up(B, 8)
        x = pad_input(bp, k_pad)
        vmem = pl.BlockSpec(memory_space=pltpu.MemorySpace.VMEM)
        out = pl.pallas_call(
            qnetwork_kernel,
            out_shape=jax.ShapeDtypeStruct((bp, action_size), jnp.float32),
            in_specs=[vmem] * 9,
            out_specs=vmem,
        )(x, *flat)
        return out[:B] if bp != B else out

    # --- Batch-tiled path: grid over batch, weights resident across tiles.
    # Balance tile size so the grid always has >=2 steps (v7x megacore) and
    # padding waste stays small.
    tiles = max(2, -(-B // block_b))
    tb = _round_up(-(-B // tiles), 8)
    bp = tb * tiles
    x = pad_input(bp, k_pad)

    def resident_spec(shape):
        # Constant block index -> fetched once, stays in VMEM across tiles.
        return pl.BlockSpec(shape, lambda i: (0,) * len(shape))

    in_specs = [pl.BlockSpec((tb, k_pad), lambda i: (i, 0))]
    in_specs += [resident_spec(a.shape) for a in flat]
    out_specs = pl.BlockSpec((tb, action_size), lambda i: (i, 0))

    flops = int(2 * bp * sum(int(w.shape[0]) * int(w.shape[1])
                             for w in (w1, w2, w3, w4)))
    bytes_accessed = int(x.size * x.dtype.itemsize
                         + bp * action_size * 4
                         + sum(a.size * a.dtype.itemsize for a in flat))

    out = pl.pallas_call(
        qnetwork_kernel,
        out_shape=jax.ShapeDtypeStruct((bp, action_size), jnp.float32),
        grid=(tiles,),
        in_specs=in_specs,
        out_specs=out_specs,
        compiler_params=pltpu.CompilerParams(
            dimension_semantics=("parallel",),     # v7x: split batch over TCs
            vmem_limit_bytes=32 * 1024 * 1024,     # big tiles also fit on v5e
        ),
        cost_estimate=pl.CostEstimate(flops=flops, transcendentals=0,
                                      bytes_accessed=bytes_accessed),
    )(x, *flat)
    return out[:B] if bp != B else out


def qnetwork_reference(state, packed_params, action_size):
    """Pure-JAX reference using the same packed (bf16, padded) params."""
    k_pad = packed_params[0][0].shape[0]
    B, S = state.shape
    h = jnp.pad(state, ((0, 0), (0, k_pad - S))) if k_pad != S else state
    n = len(packed_params)
    for idx, (w, b) in enumerate(packed_params):
        h = jnp.dot(h.astype(w.dtype), w,
                    preferred_element_type=jnp.float32) + b
        if idx < n - 1:
            h = jnp.maximum(h, 0.0)
    return h[:, :action_size]


if __name__ == "__main__":
    key = jax.random.PRNGKey(0)

    # Small shapes consistent with the module (Banana-navigation style dims).
    batch, state_size, action_size = 8, 37, 4

    key, kp, kx, kx2 = jax.random.split(key, 4)
    params = init_qnetwork_params(kp, state_size, action_size)
    packed = pack_params(params)

    # Small-batch path (single VMEM-resident block, no grid).
    state = jax.random.normal(kx, (batch, state_size), jnp.float32)
    q = jax.block_until_ready(
        qnetwork_forward(state, packed, action_size=action_size))
    q_ref = qnetwork_reference(state, packed, action_size)
    assert q.shape == (batch, action_size), q.shape
    assert jnp.allclose(q, q_ref, atol=1e-2, rtol=1e-2), \
        float(jnp.max(jnp.abs(q - q_ref)))

    # Larger batch exercises the tiled grid path (>=2 parallel tiles, ragged
    # batch tail, column padding 37->48).
    big_batch = 600
    state2 = jax.random.normal(kx2, (big_batch, state_size), jnp.float32)
    q2 = jax.block_until_ready(
        qnetwork_forward(state2, packed, action_size=action_size))
    q2_ref = qnetwork_reference(state2, packed, action_size)
    assert q2.shape == (big_batch, action_size), q2.shape
    assert jnp.allclose(q2, q2_ref, atol=1e-2, rtol=1e-2), \
        float(jnp.max(jnp.abs(q2 - q2_ref)))

    print("KERNEL_OK")
</pallas_src>

<mosaic_0001>
module attributes {stable_mosaic.version = 11 : i64} {
  func.func @qnetwork_kernel(%arg0: memref<8x48xf32, #tpu.memory_space<vmem>>, %arg1: memref<48x512xbf16, #tpu.memory_space<vmem>>, %arg2: memref<1x512xf32, #tpu.memory_space<vmem>>, %arg3: memref<512x128xbf16, #tpu.memory_space<vmem>>, %arg4: memref<1x128xf32, #tpu.memory_space<vmem>>, %arg5: memref<128x128xbf16, #tpu.memory_space<vmem>>, %arg6: memref<1x128xf32, #tpu.memory_space<vmem>>, %arg7: memref<128x128xbf16, #tpu.memory_space<vmem>>, %arg8: memref<1x128xf32, #tpu.memory_space<vmem>>, %arg9: memref<8x4xf32, #tpu.memory_space<vmem>>) attributes {dimension_semantics = [], scalar_prefetch = 0 : i64, scratch_operands = 0 : i64, tpu.core_type = #tpu.core_type<tc>} {
    %c0 = arith.constant 0 : index
    %c0_0 = arith.constant 0 : index
    %0 = vector.load %arg0[%c0, %c0_0] : memref<8x48xf32, #tpu.memory_space<vmem>>, vector<8x48xf32>
    %1 = arith.truncf %0 : vector<8x48xf32> to vector<8x48xbf16>
    %c0_1 = arith.constant 0 : index
    %c0_2 = arith.constant 0 : index
    %2 = vector.load %arg1[%c0_1, %c0_2] : memref<48x512xbf16, #tpu.memory_space<vmem>>, vector<48x512xbf16>
    %cst = arith.constant dense<0.000000e+00> : vector<8x512xf32>
    %3 = tpu.matmul %1, %2, %cst {dimension_numbers = #tpu.dot_dimension_numbers<[1], [0], [0], [1], [0, 0, 1, 1], [], []>} : vector<8x48xbf16>, vector<48x512xbf16>, vector<8x512xf32> -> vector<8x512xf32>
    %c0_3 = arith.constant 0 : index
    %c0_4 = arith.constant 0 : index
    %4 = vector.load %arg2[%c0_3, %c0_4] : memref<1x512xf32, #tpu.memory_space<vmem>>, vector<1x512xf32>
    %5 = vector.broadcast %4 : vector<1x512xf32> to vector<8x512xf32>
    %6 = arith.addf %3, %5 : vector<8x512xf32>
    %7 = arith.truncf %6 : vector<8x512xf32> to vector<8x512xbf16>
    %cst_5 = arith.constant 0.000000e+00 : bf16
    %8 = vector.broadcast %cst_5 : bf16 to vector<8x512xbf16>
    %9 = arith.maximumf %7, %8 : vector<8x512xbf16>
    %c0_6 = arith.constant 0 : index
    %c0_7 = arith.constant 0 : index
    %10 = vector.load %arg3[%c0_6, %c0_7] : memref<512x128xbf16, #tpu.memory_space<vmem>>, vector<512x128xbf16>
    %cst_8 = arith.constant dense<0.000000e+00> : vector<8x128xf32>
    %11 = tpu.matmul %9, %10, %cst_8 {dimension_numbers = #tpu.dot_dimension_numbers<[1], [0], [0], [1], [0, 0, 1, 1], [], []>} : vector<8x512xbf16>, vector<512x128xbf16>, vector<8x128xf32> -> vector<8x128xf32>
    %c0_9 = arith.constant 0 : index
    %c0_10 = arith.constant 0 : index
    %12 = vector.load %arg4[%c0_9, %c0_10] : memref<1x128xf32, #tpu.memory_space<vmem>>, vector<1x128xf32>
    %13 = vector.broadcast %12 : vector<1x128xf32> to vector<8x128xf32>
    %14 = arith.addf %11, %13 : vector<8x128xf32>
    %15 = arith.truncf %14 : vector<8x128xf32> to vector<8x128xbf16>
    %cst_11 = arith.constant 0.000000e+00 : bf16
    %16 = vector.broadcast %cst_11 : bf16 to vector<8x128xbf16>
    %17 = arith.maximumf %15, %16 : vector<8x128xbf16>
    %c0_12 = arith.constant 0 : index
    %c0_13 = arith.constant 0 : index
    %18 = vector.load %arg5[%c0_12, %c0_13] : memref<128x128xbf16, #tpu.memory_space<vmem>>, vector<128x128xbf16>
    %cst_14 = arith.constant dense<0.000000e+00> : vector<8x128xf32>
    %19 = tpu.matmul %17, %18, %cst_14 {dimension_numbers = #tpu.dot_dimension_numbers<[1], [0], [0], [1], [0, 0, 1, 1], [], []>} : vector<8x128xbf16>, vector<128x128xbf16>, vector<8x128xf32> -> vector<8x128xf32>
    %c0_15 = arith.constant 0 : index
    %c0_16 = arith.constant 0 : index
    %20 = vector.load %arg6[%c0_15, %c0_16] : memref<1x128xf32, #tpu.memory_space<vmem>>, vector<1x128xf32>
    %21 = vector.broadcast %20 : vector<1x128xf32> to vector<8x128xf32>
    %22 = arith.addf %19, %21 : vector<8x128xf32>
    %23 = arith.truncf %22 : vector<8x128xf32> to vector<8x128xbf16>
    %cst_17 = arith.constant 0.000000e+00 : bf16
    %24 = vector.broadcast %cst_17 : bf16 to vector<8x128xbf16>
    %25 = arith.maximumf %23, %24 : vector<8x128xbf16>
    %c0_18 = arith.constant 0 : index
    %c0_19 = arith.constant 0 : index
    %26 = vector.load %arg7[%c0_18, %c0_19] : memref<128x128xbf16, #tpu.memory_space<vmem>>, vector<128x128xbf16>
    %cst_20 = arith.constant dense<0.000000e+00> : vector<8x128xf32>
    %27 = tpu.matmul %25, %26, %cst_20 {dimension_numbers = #tpu.dot_dimension_numbers<[1], [0], [0], [1], [0, 0, 1, 1], [], []>} : vector<8x128xbf16>, vector<128x128xbf16>, vector<8x128xf32> -> vector<8x128xf32>
    %c0_21 = arith.constant 0 : index
    %c0_22 = arith.constant 0 : index
    %28 = vector.load %arg8[%c0_21, %c0_22] : memref<1x128xf32, #tpu.memory_space<vmem>>, vector<1x128xf32>
    %29 = vector.broadcast %28 : vector<1x128xf32> to vector<8x128xf32>
    %30 = arith.addf %27, %29 : vector<8x128xf32>
    %31 = vector.extract_strided_slice %30 {offsets = [0, 0], sizes = [8, 4], strides = [1, 1]} : vector<8x128xf32> to vector<8x4xf32>
    %c0_23 = arith.constant 0 : index
    %c0_24 = arith.constant 0 : index
    %32 = vector.load %arg9[%c0_23, %c0_24] : memref<8x4xf32, #tpu.memory_space<vmem>>, vector<8x4xf32>
    tpu.vector_store %arg9[%c0_23, %c0_24], %31 {strides = array<i32>} : memref<8x4xf32, #tpu.memory_space<vmem>>, vector<8x4xf32>,
    return
  }
}

</mosaic_0001>

<llo_original>
// kernel: tpu_custom_call.1
$region0: #{tpu_custom_call.1}
  #allocation0 [shape = 'u32[]', space=smem, size = 0x4, offset = 0x4, fixed_abs, tag = 'smem constant byte address 0x4 - core index']
  #allocation1 [shape = 'u32[144,128]{1,0:T(1,128)}', space=vmem, size = 0x12000, scoped, tag = 'internal scratch']
  %s0 = inlined_call_operand.hbm [shape: f32[8,48], index: 0, kind: input, shape index: {}]
  %s1 = inlined_call_operand.hbm [shape: bf16[48,512], index: 1, kind: input, shape index: {}]
  %s2 = inlined_call_operand.hbm [shape: f32[1,512], index: 2, kind: input, shape index: {}]
  %s3 = inlined_call_operand.hbm [shape: bf16[512,128], index: 3, kind: input, shape index: {}]
  %s4 = inlined_call_operand.vmem [shape: f32[1,128], index: 4, kind: input, shape index: {}]
  %s5 = inlined_call_operand.hbm [shape: bf16[128,128], index: 5, kind: input, shape index: {}]
  %s6 = inlined_call_operand.vmem [shape: f32[1,128], index: 6, kind: input, shape index: {}]
  %s7 = inlined_call_operand.hbm [shape: bf16[128,128], index: 7, kind: input, shape index: {}]
  %s8 = inlined_call_operand.vmem [shape: f32[1,128], index: 8, kind: input, shape index: {}]
  %s9 = inlined_call_operand.vmem [shape: f32[8,4], index: 9, kind: output, shape index: {}]
  %s10 = sld [smem:[#allocation0]]
  $region70: #{tpu_custom_call.1} parent=0
    _
  %s12 = ssub.s32 1, %s10
  %s13 = scalar_select 0, %s12, %s10
  $region1: #{tpu_custom_call.1} parent=0
    #allocation2 [shape = 'u8[4096]{0}', space=vmem, size = 0x1000, scoped, tag = 'input window, operand 0, single buffered']
    #allocation3 [shape = 's32[1]{0}', space=sflag, size = 0x4, scoped, tag = 'scoped memory for tpu_custom_call.1']
    #allocation4 [shape = 'u8[49152]{0}', space=vmem, size = 0xc000, scoped, tag = 'input window, operand 1, single buffered']
    #allocation5 [shape = 's32[1]{0}', space=sflag, size = 0x4, scoped, tag = 'scoped memory for tpu_custom_call.1']
    #allocation6 [shape = 'u8[2048]{0}', space=vmem, size = 0x800, scoped, tag = 'input window, operand 2, single buffered']
    #allocation7 [shape = 'u8[131072]{0}', space=vmem, size = 0x20000, scoped, tag = 'input window, operand 3, single buffered']
    #allocation8 [shape = 's32[1]{0}', space=sflag, size = 0x4, scoped, tag = 'scoped memory for tpu_custom_call.1']
    #allocation9 [shape = 'u8[32768]{0}', space=vmem, size = 0x8000, scoped, tag = 'input window, operand 5, single buffered']
    #allocation10 [shape = 'u8[32768]{0}', space=vmem, size = 0x8000, scoped, tag = 'input window, operand 7, single buffered']
    #allocation11 [shape = 's32[1]{0}', space=sflag, size = 0x4, scoped, tag = 'scoped memory for tpu_custom_call.1']
    %14 = vsyncpa [#allocation3], 0
    %15 = vsyncpa [#allocation5], 0
    %16 = vsyncpa [#allocation8], 0
    %17 = vsyncpa [#allocation11], 0
    // Predicated region
    $region2: #{tpu_custom_call.1} parent=1 // pred_check
      _
    $region3: #{tpu_custom_call.1} parent=1 // pred_check_branch
      %19 = sbr.rel (0) target = $region5
    $region4: #{tpu_custom_call.1} parent=1 // pred_region
      %s21 = ssub.s32 128, 128
      %22 = vsyncadd [#allocation3], %s21
      %s24 = sshll.u32 [#allocation2], 4
      %s25 = int_to_ptr.vmem [resolvable:$true] %s24
      %27 = dma.hbm_to_vmem [thread:$0]  %s0, 128, %s25, [#allocation3]
    $region5: #{tpu_custom_call.1} parent=1 // pred_fallthru
      _
    // Predicated region
    $region6: #{tpu_custom_call.1} parent=1 // pred_check
      _
    $region7: #{tpu_custom_call.1} parent=1 // pred_check_branch
      %29 = sbr.rel (0) target = $region9
    $region8: #{tpu_custom_call.1} parent=1 // pred_region
      %s31 = ssub.s32 1536, 1536
      %32 = vsyncadd [#allocation5], %s31
      %s33 = sshll.u32 [#allocation4], 4
      %s34 = int_to_ptr.vmem [resolvable:$true] %s33
      %39 = dma.hbm_to_vmem [thread:$0]  %s1, 1536, %s34, [#allocation5], 256, 256, 16
    $region9: #{tpu_custom_call.1} parent=1 // pred_fallthru
      _
    // Predicated region
    $region10: #{tpu_custom_call.1} parent=1 // pred_check
      _
    $region11: #{tpu_custom_call.1} parent=1 // pred_check_branch
      %41 = sbr.rel (0) target = $region13
    $region12: #{tpu_custom_call.1} parent=1 // pred_region
      %s43 = ssub.s32 64, 64
      %44 = vsyncadd [#allocation5], %s43
      %s46 = sshll.u32 [#allocation6], 4
      %s47 = int_to_ptr.vmem [resolvable:$true] %s46
      %49 = dma.hbm_to_vmem [thread:$0]  %s2, 64, %s47, [#allocation5]
    $region13: #{tpu_custom_call.1} parent=1 // pred_fallthru
      _
    // Predicated region
    $region14: #{tpu_custom_call.1} parent=1 // pred_check
      _
    $region15: #{tpu_custom_call.1} parent=1 // pred_check_branch
      %51 = sbr.rel (0) target = $region17
    $region16: #{tpu_custom_call.1} parent=1 // pred_region
      %s53 = ssub.s32 4096, 4096
      %54 = vsyncadd [#allocation8], %s53
      %s55 = sshll.u32 [#allocation7], 4
      %s56 = int_to_ptr.vmem [resolvable:$true] %s55
      %61 = dma.hbm_to_vmem [thread:$0]  %s3, 4096, %s56, [#allocation8], 64, 64, 4
    $region17: #{tpu_custom_call.1} parent=1 // pred_fallthru
      _
    // Predicated region
    $region18: #{tpu_custom_call.1} parent=1 // pred_check
      _
    $region19: #{tpu_custom_call.1} parent=1 // pred_check_branch
      %63 = sbr.rel (0) target = $region21
    $region20: #{tpu_custom_call.1} parent=1 // pred_region
      _
    $region21: #{tpu_custom_call.1} parent=1 // pred_fallthru
      _
    // Predicated region
    $region22: #{tpu_custom_call.1} parent=1 // pred_check
      _
    $region23: #{tpu_custom_call.1} parent=1 // pred_check_branch
      %65 = sbr.rel (0) target = $region25
    $region24: #{tpu_custom_call.1} parent=1 // pred_region
      %s67 = ssub.s32 1024, 1024
      %68 = vsyncadd [#allocation8], %s67
      %s69 = sshll.u32 [#allocation9], 4
      %s70 = int_to_ptr.vmem [resolvable:$true] %s69
      %75 = dma.hbm_to_vmem [thread:$0]  %s5, 1024, %s70, [#allocation8], 64, 64, 4
    $region25: #{tpu_custom_call.1} parent=1 // pred_fallthru
      _
    // Predicated region
    $region26: #{tpu_custom_call.1} parent=1 // pred_check
      _
    $region27: #{tpu_custom_call.1} parent=1 // pred_check_branch
      %77 = sbr.rel (0) target = $region29
    $region28: #{tpu_custom_call.1} parent=1 // pred_region
      _
    $region29: #{tpu_custom_call.1} parent=1 // pred_fallthru
      _
    // Predicated region
    $region30: #{tpu_custom_call.1} parent=1 // pred_check
      _
    $region31: #{tpu_custom_call.1} parent=1 // pred_check_branch
      %79 = sbr.rel (0) target = $region33
    $region32: #{tpu_custom_call.1} parent=1 // pred_region
      %s81 = ssub.s32 1024, 1024
      %82 = vsyncadd [#allocation11], %s81
      %s83 = sshll.u32 [#allocation10], 4
      %s84 = int_to_ptr.vmem [resolvable:$true] %s83
      %89 = dma.hbm_to_vmem [thread:$0]  %s7, 1024, %s84, [#allocation11], 64, 64, 4
    $region33: #{tpu_custom_call.1} parent=1 // pred_fallthru
      _
    // Predicated region
    $region34: #{tpu_custom_call.1} parent=1 // pred_check
      _
    $region35: #{tpu_custom_call.1} parent=1 // pred_check_branch
      %91 = sbr.rel (0) target = $region37
    $region36: #{tpu_custom_call.1} parent=1 // pred_region
      _
    $region37: #{tpu_custom_call.1} parent=1 // pred_fallthru
      _
    // Predicated region
    $region38: #{tpu_custom_call.1} parent=1 // pred_check
      _
    $region39: #{tpu_custom_call.1} parent=1 // pred_check_branch
      %93 = sbr.rel (0) target = $region41
    $region40: #{tpu_custom_call.1} parent=1 // pred_region
      %94 = dma.done [#allocation3], 128
    $region41: #{tpu_custom_call.1} parent=1 // pred_fallthru
      _
    // Predicated region
    $region42: #{tpu_custom_call.1} parent=1 // pred_check
      _
    $region43: #{tpu_custom_call.1} parent=1 // pred_check_branch
      %96 = sbr.rel (0) target = $region45
    $region44: #{tpu_custom_call.1} parent=1 // pred_region
      %97 = dma.done [#allocation5], 1536
    $region45: #{tpu_custom_call.1} parent=1 // pred_fallthru
      _
    // Predicated region
    $region46: #{tpu_custom_call.1} parent=1 // pred_check
      _
    $region47: #{tpu_custom_call.1} parent=1 // pred_check_branch
      %99 = sbr.rel (0) target = $region49
    $region48: #{tpu_custom_call.1} parent=1 // pred_region
      %100 = dma.done [#allocation5], 64
    $region49: #{tpu_custom_call.1} parent=1 // pred_fallthru
      _
    // Predicated region
    $region50: #{tpu_custom_call.1} parent=1 // pred_check
      _
    $region51: #{tpu_custom_call.1} parent=1 // pred_check_branch
      %102 = sbr.rel (0) target = $region53
    $region52: #{tpu_custom_call.1} parent=1 // pred_region
      %103 = dma.done [#allocation8], 4096
    $region53: #{tpu_custom_call.1} parent=1 // pred_fallthru
      _
    // Predicated region
    $region54: #{tpu_custom_call.1} parent=1 // pred_check
      _
    $region55: #{tpu_custom_call.1} parent=1 // pred_check_branch
      %105 = sbr.rel (0) target = $region57
    $region56: #{tpu_custom_call.1} parent=1 // pred_region
      %106 = dma.done [#allocation8], 1024
    $region57: #{tpu_custom_call.1} parent=1 // pred_fallthru
      _
    // Predicated region
    $region58: #{tpu_custom_call.1} parent=1 // pred_check
      _
    $region59: #{tpu_custom_call.1} parent=1 // pred_check_branch
      %108 = sbr.rel (0) target = $region61
    $region60: #{tpu_custom_call.1} parent=1 // pred_region
      %109 = dma.done [#allocation11], 1024
    $region61: #{tpu_custom_call.1} parent=1 // pred_fallthru
      _
    %v111 = vld [vmem:[#allocation2] sm:$0xff]
    %v112 = vpack.c.bf16 %v111, %v111
    %v113 = vld [vmem:[#allocation4] sm:$0xff]
    %v114 = vld [vmem:[#allocation4 + $0x8] sm:$0xff]
    %v115 = vld [vmem:[#allocation4 + $0x10] sm:$0xff]
    %v116 = vld [vmem:[#allocation4 + $0x18] sm:$0xff]
    %v117 = vld [vmem:[#allocation4 + $0x20] sm:$0xff]
    %v118 = vld [vmem:[#allocation4 + $0x28] sm:$0xff]
    %v119 = vld [vmem:[#allocation4 + $0x30] sm:$0xff]
    %v120 = vld [vmem:[#allocation4 + $0x38] sm:$0xff]
    %v121 = vld [vmem:[#allocation4 + $0x40] sm:$0xff]
    %v122 = vld [vmem:[#allocation4 + $0x48] sm:$0xff]
    %v123 = vld [vmem:[#allocation4 + $0x50] sm:$0xff]
    %v124 = vld [vmem:[#allocation4 + $0x58] sm:$0xff]
    %v125 = vld [vmem:[#allocation6] sm:$0xf]
    %v127 = vlaneseq
    %v128 = vshrl.u32 %v127, 7
    %v129 = vsub.s32 0, %v128
    %v130 = vrot.slane %v125, %v129
    %v131 = vlaneseq
    %v132 = vshrl.u32 %v131, 7
    %v133 = vsub.s32 1, %v132
    %v134 = vrot.slane %v125, %v133
    %v135 = vlaneseq
    %v136 = vshrl.u32 %v135, 7
    %v137 = vsub.s32 2, %v136
    %v138 = vrot.slane %v125, %v137
    %v139 = vlaneseq
    %v140 = vshrl.u32 %v139, 7
    %v141 = vsub.s32 3, %v140
    %v142 = vrot.slane %v125, %v141
    %v159 = vunpack.c.l.b16 %v113
    %v160 = vunpack.c.h.b16 %v113
    %v161 = vunpack.c.l.b16 %v114
    %v162 = vunpack.c.h.b16 %v114
    %v163 = vunpack.c.l.b16 %v115
    %v164 = vunpack.c.h.b16 %v115
    %v165 = vunpack.c.l.b16 %v116
    %v166 = vunpack.c.h.b16 %v116
    %v167 = vunpack.c.l.b16 %v117
    %v168 = vunpack.c.h.b16 %v117
    %v169 = vunpack.c.l.b16 %v118
    %v170 = vunpack.c.h.b16 %v118
    %v171 = vunpack.c.l.b16 %v119
    %v172 = vunpack.c.h.b16 %v119
    %v173 = vunpack.c.l.b16 %v120
    %v174 = vunpack.c.h.b16 %v120
    %v175 = vunpack.c.l.b16 %v121
    %v176 = vunpack.c.h.b16 %v121
    %v177 = vunpack.c.l.b16 %v122
    %v178 = vunpack.c.h.b16 %v122
    %v179 = vunpack.c.l.b16 %v123
    %v180 = vunpack.c.h.b16 %v123
    %v181 = vunpack.c.l.b16 %v124
    %v182 = vunpack.c.h.b16 %v124
    %v183 = vpack.c.b16 %v163, %v159
    %v184 = vpack.c.b16 %v164, %v160
    %v185 = vpack.c.b16 %v165, %v161
    %v186 = vpack.c.b16 %v166, %v162
    %v187 = vpack.c.b16 %v171, %v167
    %v188 = vpack.c.b16 %v172, %v168
    %v189 = vpack.c.b16 %v173, %v169
    %v190 = vpack.c.b16 %v174, %v170
    %v191 = vpack.c.b16 %v179, %v175
    %v192 = vpack.c.b16 %v180, %v176
    %v193 = vpack.c.b16 %v181, %v177
    %v194 = vpack.c.b16 %v182, %v178
    %vm207 = vcmask 392192
    %v209 = vsel %vm207, %v112, 0
    %211 = vmatprep.subr.bf16.mxu0 0
    %212 = vmatpush1.bf16.msra.mxu0 0
    %213 = vmatprep.subr.bf16.mxu0 0
    %214 = vmatpush1.bf16.msra.mxu0 0
    %215 = vmatprep.subr.bf16.mxu0 0
    %216 = vmatpush1.bf16.msra.mxu0 0
    %217 = vmatprep.subr.bf16.mxu0 0
    %218 = vmatpush1.bf16.msra.mxu0 0
    %219 = vmatprep.subr.bf16.mxu0 0
    %220 = vmatpush1.bf16.msra.mxu0 0
    %221 = vmatprep.subr.bf16.mxu0 %v192
    %222 = vmatpush1.bf16.msra.mxu0 %v191
    %223 = vmatprep.subr.bf16.mxu0 %v188
    %224 = vmatpush1.bf16.msra.mxu0 %v187
    %225 = vmatprep.subr.bf16.mxu0 %v184
    %226 = vmatpush1.bf16.msra.mxu0 %v183
    %227 = vmatprep.subr.bf16.mxu0 0
    %228 = vmatpush2.bf16.msra.mxu0 0
    %229 = vmatprep.subr.bf16.mxu0 0
    %230 = vmatpush2.bf16.msra.mxu0 0
    %231 = vmatprep.subr.bf16.mxu0 0
    %232 = vmatpush2.bf16.msra.mxu0 0
    %233 = vmatprep.subr.bf16.mxu0 0
    %234 = vmatpush2.bf16.msra.mxu0 0
    %235 = vmatprep.subr.bf16.mxu0 0
    %236 = vmatpush2.bf16.msra.mxu0 0
    %237 = vmatprep.subr.bf16.mxu0 0
    %238 = vmatpush2.bf16.msra.mxu0 0
    %239 = vmatprep.subr.bf16.mxu0 0
    %240 = vmatpush2.bf16.msra.mxu0 0
    %241 = vmatprep.subr.bf16.mxu0 0
    %242 = vmatpush2.bf16.msra.mxu0 0
    %243 = vmatprep.mubr.bf16.mxu0 0
    %244 = vmatmul.mubr.bf16.gmra.mxu0 %v209
    %v245 = vpop.f32.mrf.mxu0
    %v246 = vadd.f32 %v130, %v245
    %v247 = vpop.f32.mrf.mxu0
    %v248 = vadd.f32 %v134, %v247
    %v249 = vpop.f32.mrf.mxu0
    %v250 = vpop.f32.mrf.mxu0
    %251 = vdwg.mxu0
    %252 = vmatprep.subr.bf16.mxu0 0
    %253 = vmatpush1.bf16.msra.mxu0 0
    %254 = vmatprep.subr.bf16.mxu0 0
    %255 = vmatpush1.bf16.msra.mxu0 0
    %256 = vmatprep.subr.bf16.mxu0 0
    %257 = vmatpush1.bf16.msra.mxu0 0
    %258 = vmatprep.subr.bf16.mxu0 0
    %259 = vmatpush1.bf16.msra.mxu0 0
    %260 = vmatprep.subr.bf16.mxu0 0
    %261 = vmatpush1.bf16.msra.mxu0 0
    %262 = vmatprep.subr.bf16.mxu0 %v194
    %263 = vmatpush1.bf16.msra.mxu0 %v193
    %264 = vmatprep.subr.bf16.mxu0 %v190
    %265 = vmatpush1.bf16.msra.mxu0 %v189
    %266 = vmatprep.subr.bf16.mxu0 %v186
    %267 = vmatpush1.bf16.msra.mxu0 %v185
    %268 = vmatprep.subr.bf16.mxu0 0
    %269 = vmatpush2.bf16.msra.mxu0 0
    %270 = vmatprep.subr.bf16.mxu0 0
    %271 = vmatpush2.bf16.msra.mxu0 0
    %272 = vmatprep.subr.bf16.mxu0 0
    %273 = vmatpush2.bf16.msra.mxu0 0
    %274 = vmatprep.subr.bf16.mxu0 0
    %275 = vmatpush2.bf16.msra.mxu0 0
    %276 = vmatprep.subr.bf16.mxu0 0
    %277 = vmatpush2.bf16.msra.mxu0 0
    %278 = vmatprep.subr.bf16.mxu0 0
    %279 = vmatpush2.bf16.msra.mxu0 0
    %280 = vmatprep.subr.bf16.mxu0 0
    %281 = vmatpush2.bf16.msra.mxu0 0
    %282 = vmatprep.subr.bf16.mxu0 0
    %283 = vmatpush2.bf16.msra.mxu0 0
    %284 = vmatprep.mubr.bf16.mxu0 0
    %285 = vmatmul.mubr.bf16.gmra.mxu0 %v209
    %v286 = vpop.f32.mrf.mxu0
    %v287 = vadd.f32 %v138, %v286
    %v288 = vpop.f32.mrf.mxu0
    %v289 = vadd.f32 %v142, %v288
    %v290 = vpop.f32.mrf.mxu0
    %v291 = vpop.f32.mrf.mxu0
    %292 = vdwg.mxu0
    %v293 = vpack.c.bf16 %v246, %v246
    %v294 = vpack.c.bf16 %v248, %v248
    %v295 = vpack.c.bf16 %v287, %v287
    %v296 = vpack.c.bf16 %v289, %v289
    %v297 = vmax.bf16 %v293, 0
    %v298 = vmax.bf16 %v294, 0
    %v299 = vmax.bf16 %v295, 0
    %v300 = vmax.bf16 %v296, 0
    %v301 = vld [vmem:[#allocation7] sm:$0xf]
    %v302 = vld [vmem:[#allocation7 + $0x4] sm:$0xf]
    %v303 = vld [vmem:[#allocation7 + $0x8] sm:$0xf]
    %v304 = vld [vmem:[#allocation7 + $0xc] sm:$0xf]
    %v305 = vld [vmem:[#allocation7 + $0x10] sm:$0xf]
    %v306 = vld [vmem:[#allocation7 + $0x14] sm:$0xf]
    %v307 = vld [vmem:[#allocation7 + $0x18] sm:$0xf]
    %v308 = vld [vmem:[#allocation7 + $0x1c] sm:$0xf]
    %v309 = vld [vmem:[#allocation7 + $0x20] sm:$0xf]
    %v310 = vld [vmem:[#allocation7 + $0x24] sm:$0xf]
    %v311 = vld [vmem:[#allocation7 + $0x28] sm:$0xf]
    %v312 = vld [vmem:[#allocation7 + $0x2c] sm:$0xf]
    %v313 = vld [vmem:[#allocation7 + $0x30] sm:$0xf]
    %v314 = vld [vmem:[#allocation7 + $0x34] sm:$0xf]
    %v315 = vld [vmem:[#allocation7 + $0x38] sm:$0xf]
    %v316 = vld [vmem:[#allocation7 + $0x3c] sm:$0xf]
    %v317 = vld [vmem:[#allocation7 + $0x40] sm:$0xf]
    %v318 = vld [vmem:[#allocation7 + $0x44] sm:$0xf]
    %v319 = vld [vmem:[#allocation7 + $0x48] sm:$0xf]
    %v320 = vld [vmem:[#allocation7 + $0x4c] sm:$0xf]
    %v321 = vld [vmem:[#allocation7 + $0x50] sm:$0xf]
    %v322 = vld [vmem:[#allocation7 + $0x54] sm:$0xf]
    %v323 = vld [vmem:[#allocation7 + $0x58] sm:$0xf]
    %v324 = vld [vmem:[#allocation7 + $0x5c] sm:$0xf]
    %v325 = vld [vmem:[#allocation7 + $0x60] sm:$0xf]
    %v326 = vld [vmem:[#allocation7 + $0x64] sm:$0xf]
    %v327 = vld [vmem:[#allocation7 + $0x68] sm:$0xf]
    %v328 = vld [vmem:[#allocation7 + $0x6c] sm:$0xf]
    %v329 = vld [vmem:[#allocation7 + $0x70] sm:$0xf]
    %v330 = vld [vmem:[#allocation7 + $0x74] sm:$0xf]
    %v331 = vld [vmem:[#allocation7 + $0x78] sm:$0xf]
    %v332 = vld [vmem:[#allocation7 + $0x7c] sm:$0xf]
    %v333 = vld [vmem:[#allocation7 + $0x80] sm:$0xf]
    %v334 = vld [vmem:[#allocation7 + $0x84] sm:$0xf]
    %v335 = vld [vmem:[#allocation7 + $0x88] sm:$0xf]
    %v336 = vld [vmem:[#allocation7 + $0x8c] sm:$0xf]
    %v337 = vld [vmem:[#allocation7 + $0x90] sm:$0xf]
    %v338 = vld [vmem:[#allocation7 + $0x94] sm:$0xf]
    %v339 = vld [vmem:[#allocation7 + $0x98] sm:$0xf]
    %v340 = vld [vmem:[#allocation7 + $0x9c] sm:$0xf]
    %v341 = vld [vmem:[#allocation7 + $0xa0] sm:$0xf]
    %v342 = vld [vmem:[#allocation7 + $0xa4] sm:$0xf]
    %v343 = vld [vmem:[#allocation7 + $0xa8] sm:$0xf]
    %v344 = vld [vmem:[#allocation7 + $0xac] sm:$0xf]
    %v345 = vld [vmem:[#allocation7 + $0xb0] sm:$0xf]
    %v346 = vld [vmem:[#allocation7 + $0xb4] sm:$0xf]
    %v347 = vld [vmem:[#allocation7 + $0xb8] sm:$0xf]
    %v348 = vld [vmem:[#allocation7 + $0xbc] sm:$0xf]
    %v349 = vld [vmem:[#allocation7 + $0xc0] sm:$0xf]
    %v350 = vld [vmem:[#allocation7 + $0xc4] sm:$0xf]
    %v351 = vld [vmem:[#allocation7 + $0xc8] sm:$0xf]
    %v352 = vld [vmem:[#allocation7 + $0xcc] sm:$0xf]
    %v353 = vld [vmem:[#allocation7 + $0xd0] sm:$0xf]
    %v354 = vld [vmem:[#allocation7 + $0xd4] sm:$0xf]
    %v355 = vld [vmem:[#allocation7 + $0xd8] sm:$0xf]
    %v356 = vld [vmem:[#allocation7 + $0xdc] sm:$0xf]
    %v357 = vld [vmem:[#allocation7 + $0xe0] sm:$0xf]
    %v358 = vld [vmem:[#allocation7 + $0xe4] sm:$0xf]
    %v359 = vld [vmem:[#allocation7 + $0xe8] sm:$0xf]
    %v360 = vld [vmem:[#allocation7 + $0xec] sm:$0xf]
    %v361 = vld [vmem:[#allocation7 + $0xf0] sm:$0xf]
    %v362 = vld [vmem:[#allocation7 + $0xf4] sm:$0xf]
    %v363 = vld [vmem:[#allocation7 + $0xf8] sm:$0xf]
    %v364 = vld [vmem:[#allocation7 + $0xfc] sm:$0xf]
    %v365 = vld [vmem:[%s4] sm:$0x1]
    %v367 = vlaneseq
    %v368 = vshrl.u32 %v367, 7
    %v369 = vsub.s32 0, %v368
    %v370 = vrot.slane %v365, %v369
    %v436 = vunpack.c.l.b16 %v301
    %v437 = vunpack.c.l.b16 %v302
    %v438 = vunpack.c.l.b16 %v303
    %v439 = vunpack.c.l.b16 %v304
    %v440 = vunpack.c.l.b16 %v305
    %v441 = vunpack.c.l.b16 %v306
    %v442 = vunpack.c.l.b16 %v307
    %v443 = vunpack.c.l.b16 %v308
    %v444 = vunpack.c.l.b16 %v309
    %v445 = vunpack.c.l.b16 %v310
    %v446 = vunpack.c.l.b16 %v311
    %v447 = vunpack.c.l.b16 %v312
    %v448 = vunpack.c.l.b16 %v313
    %v449 = vunpack.c.l.b16 %v314
    %v450 = vunpack.c.l.b16 %v315
    %v451 = vunpack.c.l.b16 %v316
    %v452 = vunpack.c.l.b16 %v317
    %v453 = vunpack.c.l.b16 %v318
    %v454 = vunpack.c.l.b16 %v319
    %v455 = vunpack.c.l.b16 %v320
    %v456 = vunpack.c.l.b16 %v321
    %v457 = vunpack.c.l.b16 %v322
    %v458 = vunpack.c.l.b16 %v323
    %v459 = vunpack.c.l.b16 %v324
    %v460 = vunpack.c.l.b16 %v325
    %v461 = vunpack.c.l.b16 %v326
    %v462 = vunpack.c.l.b16 %v327
    %v463 = vunpack.c.l.b16 %v328
    %v464 = vunpack.c.l.b16 %v329
    %v465 = vunpack.c.l.b16 %v330
    %v466 = vunpack.c.l.b16 %v331
    %v467 = vunpack.c.l.b16 %v332
    %v468 = vunpack.c.l.b16 %v333
    %v469 = vunpack.c.l.b16 %v334
    %v470 = vunpack.c.l.b16 %v335
    %v471 = vunpack.c.l.b16 %v336
    %v472 = vunpack.c.l.b16 %v337
    %v473 = vunpack.c.l.b16 %v338
    %v474 = vunpack.c.l.b16 %v339
    %v475 = vunpack.c.l.b16 %v340
    %v476 = vunpack.c.l.b16 %v341
    %v477 = vunpack.c.l.b16 %v342
    %v478 = vunpack.c.l.b16 %v343
    %v479 = vunpack.c.l.b16 %v344
    %v480 = vunpack.c.l.b16 %v345
    %v481 = vunpack.c.l.b16 %v346
    %v482 = vunpack.c.l.b16 %v347
    %v483 = vunpack.c.l.b16 %v348
    %v484 = vunpack.c.l.b16 %v349
    %v485 = vunpack.c.l.b16 %v350
    %v486 = vunpack.c.l.b16 %v351
    %v487 = vunpack.c.l.b16 %v352
    %v488 = vunpack.c.l.b16 %v353
    %v489 = vunpack.c.l.b16 %v354
    %v490 = vunpack.c.l.b16 %v355
    %v491 = vunpack.c.l.b16 %v356
    %v492 = vunpack.c.l.b16 %v357
    %v493 = vunpack.c.l.b16 %v358
    %v494 = vunpack.c.l.b16 %v359
    %v495 = vunpack.c.l.b16 %v360
    %v496 = vunpack.c.l.b16 %v361
    %v497 = vunpack.c.l.b16 %v362
    %v498 = vunpack.c.l.b16 %v363
    %v499 = vunpack.c.l.b16 %v364
    %v500 = vpack.c.b16 %v437, %v436
    %v501 = vpack.c.b16 %v439, %v438
    %v502 = vpack.c.b16 %v441, %v440
    %v503 = vpack.c.b16 %v443, %v442
    %v504 = vpack.c.b16 %v445, %v444
    %v505 = vpack.c.b16 %v447, %v446
    %v506 = vpack.c.b16 %v449, %v448
    %v507 = vpack.c.b16 %v451, %v450
    %v508 = vpack.c.b16 %v453, %v452
    %v509 = vpack.c.b16 %v455, %v454
    %v510 = vpack.c.b16 %v457, %v456
    %v511 = vpack.c.b16 %v459, %v458
    %v512 = vpack.c.b16 %v461, %v460
    %v513 = vpack.c.b16 %v463, %v462
    %v514 = vpack.c.b16 %v465, %v464
    %v515 = vpack.c.b16 %v467, %v466
    %v516 = vpack.c.b16 %v469, %v468
    %v517 = vpack.c.b16 %v471, %v470
    %v518 = vpack.c.b16 %v473, %v472
    %v519 = vpack.c.b16 %v475, %v474
    %v520 = vpack.c.b16 %v477, %v476
    %v521 = vpack.c.b16 %v479, %v478
    %v522 = vpack.c.b16 %v481, %v480
    %v523 = vpack.c.b16 %v483, %v482
    %v524 = vpack.c.b16 %v485, %v484
    %v525 = vpack.c.b16 %v487, %v486
    %v526 = vpack.c.b16 %v489, %v488
    %v527 = vpack.c.b16 %v491, %v490
    %v528 = vpack.c.b16 %v493, %v492
    %v529 = vpack.c.b16 %v495, %v494
    %v530 = vpack.c.b16 %v497, %v496
    %v531 = vpack.c.b16 %v499, %v498
    %564 = vmatprep.subr.bf16.mxu0 0
    %565 = vmatpush1.bf16.msra.mxu0 %v507
    %566 = vmatprep.subr.bf16.mxu0 0
    %567 = vmatpush1.bf16.msra.mxu0 %v506
    %568 = vmatprep.subr.bf16.mxu0 0
    %569 = vmatpush1.bf16.msra.mxu0 %v505
    %570 = vmatprep.subr.bf16.mxu0 0
    %571 = vmatpush1.bf16.msra.mxu0 %v504
    %572 = vmatprep.subr.bf16.mxu0 0
    %573 = vmatpush1.bf16.msra.mxu0 %v503
    %574 = vmatprep.subr.bf16.mxu0 0
    %575 = vmatpush1.bf16.msra.mxu0 %v502
    %576 = vmatprep.subr.bf16.mxu0 0
    %577 = vmatpush1.bf16.msra.mxu0 %v501
    %578 = vmatprep.subr.bf16.mxu0 0
    %579 = vmatpush1.bf16.msra.mxu0 %v500
    %580 = vmatprep.subr.bf16.mxu0 0
    %581 = vmatpush2.bf16.msra.mxu0 %v515
    %582 = vmatprep.subr.bf16.mxu0 0
    %583 = vmatpush2.bf16.msra.mxu0 %v514
    %584 = vmatprep.subr.bf16.mxu0 0
    %585 = vmatpush2.bf16.msra.mxu0 %v513
    %586 = vmatprep.subr.bf16.mxu0 0
    %587 = vmatpush2.bf16.msra.mxu0 %v512
    %588 = vmatprep.subr.bf16.mxu0 0
    %589 = vmatpush2.bf16.msra.mxu0 %v511
    %590 = vmatprep.subr.bf16.mxu0 0
    %591 = vmatpush2.bf16.msra.mxu0 %v510
    %592 = vmatprep.subr.bf16.mxu0 0
    %593 = vmatpush2.bf16.msra.mxu0 %v509
    %594 = vmatprep.subr.bf16.mxu0 0
    %595 = vmatpush2.bf16.msra.mxu0 %v508
    %596 = vmatprep.mubr.bf16.mxu0 %v298
    %597 = vmatmul.mubr.bf16.gmra.mxu0 %v297
    %v598 = vpop.f32.mrf.mxu0
    %v599 = vadd.f32 %v370, %v598
    %v600 = vpop.f32.mrf.mxu0
    %v601 = vpop.f32.mrf.mxu0
    %v602 = vpop.f32.mrf.mxu0
    %603 = vdwg.mxu0
    %604 = vmatprep.subr.bf16.mxu0 0
    %605 = vmatpush1.bf16.msra.mxu0 %v523
    %606 = vmatprep.subr.bf16.mxu0 0
    %607 = vmatpush1.bf16.msra.mxu0 %v522
    %608 = vmatprep.subr.bf16.mxu0 0
    %609 = vmatpush1.bf16.msra.mxu0 %v521
    %610 = vmatprep.subr.bf16.mxu0 0
    %611 = vmatpush1.bf16.msra.mxu0 %v520
    %612 = vmatprep.subr.bf16.mxu0 0
    %613 = vmatpush1.bf16.msra.mxu0 %v519
    %614 = vmatprep.subr.bf16.mxu0 0
    %615 = vmatpush1.bf16.msra.mxu0 %v518
    %616 = vmatprep.subr.bf16.mxu0 0
    %617 = vmatpush1.bf16.msra.mxu0 %v517
    %618 = vmatprep.subr.bf16.mxu0 0
    %619 = vmatpush1.bf16.msra.mxu0 %v516
    %620 = vmatprep.subr.bf16.mxu0 0
    %621 = vmatpush2.bf16.msra.mxu0 %v531
    %622 = vmatprep.subr.bf16.mxu0 0
    %623 = vmatpush2.bf16.msra.mxu0 %v530
    %624 = vmatprep.subr.bf16.mxu0 0
    %625 = vmatpush2.bf16.msra.mxu0 %v529
    %626 = vmatprep.subr.bf16.mxu0 0
    %627 = vmatpush2.bf16.msra.mxu0 %v528
    %628 = vmatprep.subr.bf16.mxu0 0
    %629 = vmatpush2.bf16.msra.mxu0 %v527
    %630 = vmatprep.subr.bf16.mxu0 0
    %631 = vmatpush2.bf16.msra.mxu0 %v526
    %632 = vmatprep.subr.bf16.mxu0 0
    %633 = vmatpush2.bf16.msra.mxu0 %v525
    %634 = vmatprep.subr.bf16.mxu0 0
    %635 = vmatpush2.bf16.msra.mxu0 %v524
    %636 = vmatprep.mubr.bf16.mxu0 %v300
    %637 = vmatmul.mubr.bf16.gmra.mxu0 %v299
    %v638 = vpop.f32.mrf.mxu0
    %v639 = vadd.f32 %v599, %v638
    %v640 = vpop.f32.mrf.mxu0
    %v641 = vpop.f32.mrf.mxu0
    %v642 = vpop.f32.mrf.mxu0
    %643 = vdwg.mxu0
    %v644 = vpack.c.bf16 %v639, %v639
    %v645 = vmax.bf16 %v644, 0
    %v646 = vld [vmem:[#allocation9] sm:$0xf]
    %v647 = vld [vmem:[#allocation9 + $0x4] sm:$0xf]
    %v648 = vld [vmem:[#allocation9 + $0x8] sm:$0xf]
    %v649 = vld [vmem:[#allocation9 + $0xc] sm:$0xf]
    %v650 = vld [vmem:[#allocation9 + $0x10] sm:$0xf]
    %v651 = vld [vmem:[#allocation9 + $0x14] sm:$0xf]
    %v652 = vld [vmem:[#allocation9 + $0x18] sm:$0xf]
    %v653 = vld [vmem:[#allocation9 + $0x1c] sm:$0xf]
    %v654 = vld [vmem:[#allocation9 + $0x20] sm:$0xf]
    %v655 = vld [vmem:[#allocation9 + $0x24] sm:$0xf]
    %v656 = vld [vmem:[#allocation9 + $0x28] sm:$0xf]
    %v657 = vld [vmem:[#allocation9 + $0x2c] sm:$0xf]
    %v658 = vld [vmem:[#allocation9 + $0x30] sm:$0xf]
    %v659 = vld [vmem:[#allocation9 + $0x34] sm:$0xf]
    %v660 = vld [vmem:[#allocation9 + $0x38] sm:$0xf]
    %v661 = vld [vmem:[#allocation9 + $0x3c] sm:$0xf]
    %v662 = vld [vmem:[%s6] sm:$0x1]
    %v664 = vlaneseq
    %v665 = vshrl.u32 %v664, 7
    %v666 = vsub.s32 0, %v665
    %v667 = vrot.slane %v662, %v666
    %v685 = vunpack.c.l.b16 %v646
    %v686 = vunpack.c.l.b16 %v647
    %v687 = vunpack.c.l.b16 %v648
    %v688 = vunpack.c.l.b16 %v649
    %v689 = vunpack.c.l.b16 %v650
    %v690 = vunpack.c.l.b16 %v651
    %v691 = vunpack.c.l.b16 %v652
    %v692 = vunpack.c.l.b16 %v653
    %v693 = vunpack.c.l.b16 %v654
    %v694 = vunpack.c.l.b16 %v655
    %v695 = vunpack.c.l.b16 %v656
    %v696 = vunpack.c.l.b16 %v657
    %v697 = vunpack.c.l.b16 %v658
    %v698 = vunpack.c.l.b16 %v659
    %v699 = vunpack.c.l.b16 %v660
    %v700 = vunpack.c.l.b16 %v661
    %v701 = vpack.c.b16 %v686, %v685
    %v702 = vpack.c.b16 %v688, %v687
    %v703 = vpack.c.b16 %v690, %v689
    %v704 = vpack.c.b16 %v692, %v691
    %v705 = vpack.c.b16 %v694, %v693
    %v706 = vpack.c.b16 %v696, %v695
    %v707 = vpack.c.b16 %v698, %v697
    %v708 = vpack.c.b16 %v700, %v699
    %717 = vmatprep.subr.bf16.mxu0 0
    %718 = vmatpush1.bf16.msra.mxu0 %v708
    %719 = vmatprep.subr.bf16.mxu0 0
    %720 = vmatpush1.bf16.msra.mxu0 %v707
    %721 = vmatprep.subr.bf16.mxu0 0
    %722 = vmatpush1.bf16.msra.mxu0 %v706
    %723 = vmatprep.subr.bf16.mxu0 0
    %724 = vmatpush1.bf16.msra.mxu0 %v705
    %725 = vmatprep.subr.bf16.mxu0 0
    %726 = vmatpush1.bf16.msra.mxu0 %v704
    %727 = vmatprep.subr.bf16.mxu0 0
    %728 = vmatpush1.bf16.msra.mxu0 %v703
    %729 = vmatprep.subr.bf16.mxu0 0
    %730 = vmatpush1.bf16.msra.mxu0 %v702
    %731 = vmatprep.subr.bf16.mxu0 0
    %732 = vmatpush1.bf16.msra.mxu0 %v701
    %733 = vmatprep.subr.bf16.mxu0 0
    %734 = vmatpush2.bf16.msra.mxu0 0
    %735 = vmatprep.subr.bf16.mxu0 0
    %736 = vmatpush2.bf16.msra.mxu0 0
    %737 = vmatprep.subr.bf16.mxu0 0
    %738 = vmatpush2.bf16.msra.mxu0 0
    %739 = vmatprep.subr.bf16.mxu0 0
    %740 = vmatpush2.bf16.msra.mxu0 0
    %741 = vmatprep.subr.bf16.mxu0 0
    %742 = vmatpush2.bf16.msra.mxu0 0
    %743 = vmatprep.subr.bf16.mxu0 0
    %744 = vmatpush2.bf16.msra.mxu0 0
    %745 = vmatprep.subr.bf16.mxu0 0
    %746 = vmatpush2.bf16.msra.mxu0 0
    %747 = vmatprep.subr.bf16.mxu0 0
    %748 = vmatpush2.bf16.msra.mxu0 0
    %749 = vmatprep.mubr.bf16.mxu0 0
    %750 = vmatmul.mubr.bf16.gmra.mxu0 %v645
    %v751 = vpop.f32.mrf.mxu0
    %v752 = vadd.f32 %v667, %v751
    %v753 = vpop.f32.mrf.mxu0
    %v754 = vpop.f32.mrf.mxu0
    %v755 = vpop.f32.mrf.mxu0
    %756 = vdwg.mxu0
    %v757 = vpack.c.bf16 %v752, %v752
    %v758 = vmax.bf16 %v757, 0
    %v759 = vld [vmem:[#allocation10] sm:$0xf]
    %v760 = vld [vmem:[#allocation10 + $0x4] sm:$0xf]
    %v761 = vld [vmem:[#allocation10 + $0x8] sm:$0xf]
    %v762 = vld [vmem:[#allocation10 + $0xc] sm:$0xf]
    %v763 = vld [vmem:[#allocation10 + $0x10] sm:$0xf]
    %v764 = vld [vmem:[#allocation10 + $0x14] sm:$0xf]
    %v765 = vld [vmem:[#allocation10 + $0x18] sm:$0xf]
    %v766 = vld [vmem:[#allocation10 + $0x1c] sm:$0xf]
    %v767 = vld [vmem:[#allocation10 + $0x20] sm:$0xf]
    %v768 = vld [vmem:[#allocation10 + $0x24] sm:$0xf]
    %v769 = vld [vmem:[#allocation10 + $0x28] sm:$0xf]
    %v770 = vld [vmem:[#allocation10 + $0x2c] sm:$0xf]
    %v771 = vld [vmem:[#allocation10 + $0x30] sm:$0xf]
    %v772 = vld [vmem:[#allocation10 + $0x34] sm:$0xf]
    %v773 = vld [vmem:[#allocation10 + $0x38] sm:$0xf]
    %v774 = vld [vmem:[#allocation10 + $0x3c] sm:$0xf]
    %v775 = vld [vmem:[%s8] sm:$0x1]
    %v777 = vlaneseq
    %v778 = vshrl.u32 %v777, 7
    %v779 = vsub.s32 0, %v778
    %v780 = vrot.slane %v775, %v779
    %v798 = vunpack.c.l.b16 %v759
    %v799 = vunpack.c.l.b16 %v760
    %v800 = vunpack.c.l.b16 %v761
    %v801 = vunpack.c.l.b16 %v762
    %v802 = vunpack.c.l.b16 %v763
    %v803 = vunpack.c.l.b16 %v764
    %v804 = vunpack.c.l.b16 %v765
    %v805 = vunpack.c.l.b16 %v766
    %v806 = vunpack.c.l.b16 %v767
    %v807 = vunpack.c.l.b16 %v768
    %v808 = vunpack.c.l.b16 %v769
    %v809 = vunpack.c.l.b16 %v770
    %v810 = vunpack.c.l.b16 %v771
    %v811 = vunpack.c.l.b16 %v772
    %v812 = vunpack.c.l.b16 %v773
    %v813 = vunpack.c.l.b16 %v774
    %v814 = vpack.c.b16 %v799, %v798
    %v815 = vpack.c.b16 %v801, %v800
    %v816 = vpack.c.b16 %v803, %v802
    %v817 = vpack.c.b16 %v805, %v804
    %v818 = vpack.c.b16 %v807, %v806
    %v819 = vpack.c.b16 %v809, %v808
    %v820 = vpack.c.b16 %v811, %v810
    %v821 = vpack.c.b16 %v813, %v812
    %830 = vmatprep.subr.bf16.mxu0 0
    %831 = vmatpush1.bf16.msra.mxu0 %v821
    %832 = vmatprep.subr.bf16.mxu0 0
    %833 = vmatpush1.bf16.msra.mxu0 %v820
    %834 = vmatprep.subr.bf16.mxu0 0
    %835 = vmatpush1.bf16.msra.mxu0 %v819
    %836 = vmatprep.subr.bf16.mxu0 0
    %837 = vmatpush1.bf16.msra.mxu0 %v818
    %838 = vmatprep.subr.bf16.mxu0 0
    %839 = vmatpush1.bf16.msra.mxu0 %v817
    %840 = vmatprep.subr.bf16.mxu0 0
    %841 = vmatpush1.bf16.msra.mxu0 %v816
    %842 = vmatprep.subr.bf16.mxu0 0
    %843 = vmatpush1.bf16.msra.mxu0 %v815
    %844 = vmatprep.subr.bf16.mxu0 0
    %845 = vmatpush1.bf16.msra.mxu0 %v814
    %846 = vmatprep.subr.bf16.mxu0 0
    %847 = vmatpush2.bf16.msra.mxu0 0
    %848 = vmatprep.subr.bf16.mxu0 0
    %849 = vmatpush2.bf16.msra.mxu0 0
    %850 = vmatprep.subr.bf16.mxu0 0
    %851 = vmatpush2.bf16.msra.mxu0 0
    %852 = vmatprep.subr.bf16.mxu0 0
    %853 = vmatpush2.bf16.msra.mxu0 0
    %854 = vmatprep.subr.bf16.mxu0 0
    %855 = vmatpush2.bf16.msra.mxu0 0
    %856 = vmatprep.subr.bf16.mxu0 0
    %857 = vmatpush2.bf16.msra.mxu0 0
    %858 = vmatprep.subr.bf16.mxu0 0
    %859 = vmatpush2.bf16.msra.mxu0 0
    %860 = vmatprep.subr.bf16.mxu0 0
    %861 = vmatpush2.bf16.msra.mxu0 0
    %862 = vmatprep.mubr.bf16.mxu0 0
    %863 = vmatmul.mubr.bf16.gmra.mxu0 %v758
    %v864 = vpop.f32.mrf.mxu0
    %v865 = vadd.f32 %v780, %v864
    %v866 = vpop.f32.mrf.mxu0
    %v867 = vpop.f32.mrf.mxu0
    %v868 = vpop.f32.mrf.mxu0
    %869 = vdwg.mxu0
    %vm870 = vcmask 31744
    %871 = vst.msk [vmem:[%s9] sm:$0xff] %vm870, %v865
    // Predicated region
    $region62: #{tpu_custom_call.1} parent=1 // pred_check
      _
    $region63: #{tpu_custom_call.1} parent=1 // pred_check_branch
      %873 = sbr.rel (0) target = $region65
    $region64: #{tpu_custom_call.1} parent=1 // pred_region
      _
    $region65: #{tpu_custom_call.1} parent=1 // pred_fallthru
      _
    // Predicated region
    $region66: #{tpu_custom_call.1} parent=1 // pred_check
      _
    $region67: #{tpu_custom_call.1} parent=1 // pred_check_branch
      %875 = sbr.rel (0) target = $region69
    $region68: #{tpu_custom_call.1} parent=1 // pred_region
      _
    $region69: #{tpu_custom_call.1} parent=1 // pred_fallthru
      _
    %876 = vsyncpa [#allocation3], 1
    %877 = vsyncpa [#allocation5], 1
    %878 = vsyncpa [#allocation8], 1
    %879 = vsyncpa [#allocation11], 1

</llo_original>
